<compile_context>
chip_gen: v5e
topology: v5e:2x2
jax: 0.10.0
libtpu: 0.0.40
codegen_flags: <defaults>
</compile_context>

<pallas_src>
import functools

import jax
import jax.numpy as jnp
from jax.experimental import pallas as pl
from jax.experimental.pallas import tpu as pltpu


def _cdiv(a, b):
    return -(-a // b)


def _pick_batch_tile(batch, seq_out, seq_in, emb_dim, itemsize,
                     target_rows=256, vmem_budget_bytes=8 << 20):
    """Pick B_tile so M = B_tile*seq_out ~ 256 rows, within a safe VMEM budget
    (double-buffered input block must stay far below v7x's 64 MiB VMEM)."""
    bt = max(1, _cdiv(target_rows, max(seq_out, 1)))
    max_bt = max(1, vmem_budget_bytes // (2 * seq_in * emb_dim * itemsize))
    bt = min(bt, max_bt)
    if bt >= batch:
        return batch                     # whole batch in one grid step
    return max(8, (bt // 8) * 8)         # multiple of 8 for tiled output blocks


def classifier_kernel(x_ref, conv_wf_ref, attn_w1_ref, attn_w2r_ref,
                      dense_w_ref, bias_ref, out_ref, u_ref, *, window_size):
    """One grid step == B_tile titles."""
    Bt, L, E = x_ref.shape
    W = window_size
    L_out = L + 3 - W                      # Conv2d padding=(1, 0) on the seq axis
    F = conv_wf_ref.shape[1]
    A = attn_w1_ref.shape[1]
    Cp = dense_w_ref.shape[1]
    M = Bt * L_out

    # ---- build the unfolded conv input in VMEM (implicit zero padding) ------
    # u[b, l, w*E:(w+1)*E] = emb[b, l + w - 1]  (zero when the index is OOB)
    u_ref[...] = jnp.zeros_like(u_ref)
    x = x_ref[...].astype(u_ref.dtype)                 # [Bt, L, E]
    for w in range(W):                                 # static, small W
        dl = max(0, 1 - w)
        dh = min(L_out, L + 1 - w)
        u_ref[:, dl:dh, w * E:(w + 1) * E] = x[:, dl + w - 1:dh + w - 1, :]
    u = u_ref[...].reshape(M, W * E).astype(conv_wf_ref.dtype)

    conv_b = bias_ref[0:1, :F]
    attn_b1 = bias_ref[1:2, :A]
    dense_b = bias_ref[2:3, :Cp]
    attn_b2 = bias_ref[3:4, 0:1]

    # ---- fused title CNN: one [M, W*E] @ [W*E, F] matmul + bias + ReLU ------
    conv = jnp.dot(u, conv_wf_ref[...],
                   preferred_element_type=jnp.float32) + conv_b
    h = jnp.maximum(conv, 0.0)                         # [M, F], f32
    # dropout is identity at inference time (no-op here)

    # ---- additive attention over the sequence dimension ---------------------
    e = jnp.tanh(jnp.dot(h.astype(attn_w1_ref.dtype), attn_w1_ref[...],
                         preferred_element_type=jnp.float32) + attn_b1)  # [M, A]
    # scores via VPU multiply + lane reduce (avoid an N=1 MXU pass)
    s = jnp.sum(e * attn_w2r_ref[...], axis=-1, keepdims=True) + attn_b2  # [M, 1]
    s3 = s.reshape(Bt, L_out, 1)
    s3 = s3 - jnp.max(s3, axis=1, keepdims=True)       # stable softmax per title
    p = jnp.exp(s3)
    denom = jnp.sum(p, axis=1, keepdims=True)
    alpha = p * pl.reciprocal(denom, approx=True)      # [Bt, L_out, 1]

    h3 = h.reshape(Bt, L_out, F)
    news_r = jnp.sum(alpha * h3, axis=1)               # [Bt, F], f32

    # ---- final dense classifier (lane-padded C) ------------------------------
    logits = jnp.dot(news_r.astype(dense_w_ref.dtype), dense_w_ref[...],
                     preferred_element_type=jnp.float32) + dense_b
    out_ref[...] = logits.astype(out_ref.dtype)        # one lane-dense store


def classifier_forward(title_ids, params, *, window_size=3,
                       compute_dtype=jnp.bfloat16, batch_tile=None):
    """title_ids: int32 [B, L] word indices (0 == padding)."""
    emb_table = params["embedding"]                    # [V, E]
    conv_w = params["conv_w"]                          # [W, E, F]
    conv_b = params["conv_b"]                          # [1, F]
    attn_w1 = params["attn_w1"]                        # [F, A]
    attn_b1 = params["attn_b1"]                        # [1, A]
    attn_w2 = params["attn_w2"]                        # [A, 1]
    attn_b2 = params["attn_b2"]                        # [1, 1]
    dense_w = params["dense_w"]                        # [F, C]
    dense_b = params["dense_b"]                        # [1, C]

    B, L = title_ids.shape
    E = emb_table.shape[1]
    W, _, F = conv_w.shape
    A = attn_w1.shape[1]
    C = dense_w.shape[1]
    L_out = L + 3 - W                                  # Conv2d padding=(1, 0)

    LANE = 128
    Cp = _cdiv(C, LANE) * LANE                         # lane-dense logits width
    bias_w = _cdiv(max(F, A, C, 1), LANE) * LANE

    itemsize = jax.dtypes.canonicalize_dtype(compute_dtype).itemsize
    bt = batch_tile or _pick_batch_tile(B, L_out, L, E, itemsize)
    B_pad = _cdiv(B, bt) * bt
    if B_pad != B:
        title_ids = jnp.pad(title_ids, ((0, B_pad - B), (0, 0)))

    # Embedding gather stays as XLA glue; no sequence-padding HBM round trip.
    # TODO(synk): fuse the gather into the kernel via scalar-prefetched title ids.
    emb = emb_table[title_ids].astype(compute_dtype)   # [B_pad, L, E]

    # One-time weight prep: fuse conv taps along K, lane-pad the classifier.
    conv_wf = conv_w.reshape(W * E, F).astype(compute_dtype)        # [W*E, F]
    attn_w1c = attn_w1.astype(compute_dtype)                        # [F, A]
    attn_w2r = attn_w2.reshape(1, A).astype(jnp.float32)            # [1, A] (VPU)
    dense_wp = (jnp.zeros((F, Cp), jnp.float32)
                .at[:, :C].set(dense_w).astype(compute_dtype))      # [F, Cp]

    biases = jnp.zeros((4, bias_w), jnp.float32)                    # packed biases
    biases = biases.at[0, :F].set(conv_b[0])
    biases = biases.at[1, :A].set(attn_b1[0])
    biases = biases.at[2, :C].set(dense_b[0])
    biases = biases.at[3, 0].set(attn_b2[0, 0])

    kernel = functools.partial(classifier_kernel, window_size=window_size)
    out = pl.pallas_call(
        kernel,
        out_shape=jax.ShapeDtypeStruct((B_pad, Cp), jnp.float32),
        grid_spec=pltpu.PrefetchScalarGridSpec(
            num_scalar_prefetch=0,
            grid=(B_pad // bt,),
            in_specs=[
                pl.BlockSpec((bt, L, E), lambda b: (b, 0, 0)),      # titles
                pl.BlockSpec((W * E, F), lambda b: (0, 0)),         # fused conv W
                pl.BlockSpec((F, A), lambda b: (0, 0)),             # attn W1
                pl.BlockSpec((1, A), lambda b: (0, 0)),             # attn w2 row
                pl.BlockSpec((F, Cp), lambda b: (0, 0)),            # dense W (padded)
                pl.BlockSpec((4, bias_w), lambda b: (0, 0)),        # packed biases
            ],
            out_specs=pl.BlockSpec((bt, Cp), lambda b: (b, 0)),     # lane-dense logits
            scratch_shapes=[pltpu.VMEM((bt, L_out, W * E), jnp.float32)],
        ),
        compiler_params=pltpu.CompilerParams(
            dimension_semantics=("parallel",)),
    )(emb, conv_wf, attn_w1c, attn_w2r, dense_wp, biases)
    return out[:B, :C]


def classifier_reference(title_ids, params, *, window_size=3):
    """Pure-JAX reference (mirrors the PyTorch forward at inference)."""
    emb = params["embedding"][title_ids]               # [B, L, E]
    xpad = jnp.pad(emb, ((0, 0), (1, 1), (0, 0)))
    L_out = xpad.shape[1] - window_size + 1
    acc = params["conv_b"][None]                       # [1, 1, F]
    for w in range(window_size):
        acc = acc + jnp.einsum("ble,ef->blf",
                               xpad[:, w:w + L_out, :], params["conv_w"][w])
    h = jnp.maximum(acc, 0.0)                          # [B, L, F]
    e = jnp.tanh(jnp.einsum("blf,fa->bla", h, params["attn_w1"])
                 + params["attn_b1"][None])
    s = jnp.einsum("bla,ao->blo", e, params["attn_w2"]) + params["attn_b2"][None]
    alpha = jax.nn.softmax(s[..., 0], axis=1)          # [B, L]
    news_r = jnp.einsum("bl,blf->bf", alpha, h)        # [B, F]
    return news_r @ params["dense_w"] + params["dense_b"]


def make_params(key, *, word_num, embedding_dim, num_filters, window_size,
                attention_dim, category_num):
    ks = jax.random.split(key, 8)
    scale = 0.1
    embedding = scale * jax.random.normal(ks[0], (word_num, embedding_dim),
                                          jnp.float32)
    embedding = embedding.at[0].set(0.0)               # padding_idx=0
    return {
        "embedding": embedding,
        "conv_w": scale * jax.random.normal(
            ks[1], (window_size, embedding_dim, num_filters), jnp.float32),
        "conv_b": scale * jax.random.normal(ks[2], (1, num_filters), jnp.float32),
        "attn_w1": scale * jax.random.normal(
            ks[3], (num_filters, attention_dim), jnp.float32),
        "attn_b1": scale * jax.random.normal(ks[4], (1, attention_dim), jnp.float32),
        "attn_w2": scale * jax.random.normal(ks[5], (attention_dim, 1), jnp.float32),
        "attn_b2": scale * jax.random.normal(ks[6], (1, 1), jnp.float32),
        "dense_w": scale * jax.random.normal(
            ks[7], (num_filters, category_num), jnp.float32),
        "dense_b": jnp.zeros((1, category_num), jnp.float32),
    }


if __name__ == "__main__":
    # small config: word_num=50, embedding_dim=32, num_filters=16,
    # window_size=3, attention_dim=16, category_num=8
    V, E, F, W, A, C = 50, 32, 16, 3, 16, 8
    key = jax.random.PRNGKey(0)
    k_param, k_title = jax.random.split(key)
    params = make_params(k_param, word_num=V, embedding_dim=E, num_filters=F,
                         window_size=W, attention_dim=A, category_num=C)

    # --- small batch: whole batch in one grid step ---------------------------
    B, L = 2, 8
    title = jax.random.randint(k_title, (B, L), 0, V, dtype=jnp.int32)
    ref = classifier_reference(title, params, window_size=W)

    out_f32 = classifier_forward(title, params, window_size=W,
                                 compute_dtype=jnp.float32)
    jax.block_until_ready(out_f32)
    assert out_f32.shape == (B, C)
    assert jnp.allclose(out_f32, ref, atol=5e-3, rtol=5e-3), "f32 mismatch"

    out_bf16 = classifier_forward(title, params, window_size=W)  # bf16 default
    jax.block_until_ready(out_bf16)
    assert jnp.allclose(out_bf16, ref, atol=3e-2, rtol=3e-2), "bf16 mismatch"

    # --- larger batch: exercises the tiled, batch-padded multi-block grid ----
    B2 = 40
    title2 = jax.random.randint(jax.random.PRNGKey(1), (B2, L), 0, V,
                                dtype=jnp.int32)
    ref2 = classifier_reference(title2, params, window_size=W)
    out2 = classifier_forward(title2, params, window_size=W)
    jax.block_until_ready(out2)
    assert out2.shape == (B2, C)
    assert jnp.allclose(out2, ref2, atol=3e-2, rtol=3e-2), "tiled-batch mismatch"

    print("KERNEL_OK")
</pallas_src>

<mosaic_0001>
module attributes {stable_mosaic.version = 11 : i64} {
  func.func @classifier_kernel(%arg0: i32, %arg1: memref<2x8x32xf32, #tpu.memory_space<vmem>>, %arg2: memref<96x16xf32, #tpu.memory_space<vmem>>, %arg3: memref<16x16xf32, #tpu.memory_space<vmem>>, %arg4: memref<1x16xf32, #tpu.memory_space<vmem>>, %arg5: memref<16x128xf32, #tpu.memory_space<vmem>>, %arg6: memref<4x128xf32, #tpu.memory_space<vmem>>, %arg7: memref<2x128xf32, #tpu.memory_space<vmem>>, %arg8: memref<2x8x96xf32, #tpu.memory_space<vmem>>) attributes {dimension_semantics = [#tpu.dimension_semantics<parallel>], iteration_bounds = array<i64: 1>, scalar_prefetch = 0 : i64, scratch_operands = 1 : i64, tpu.core_type = #tpu.core_type<tc>, window_params = [{transform_indices = @transform_0, window_bounds = array<i64: 2, 8, 32>}, {pipeline_mode = #tpu.pipeline_mode<synchronous>, transform_indices = @transform_1, window_bounds = array<i64: 96, 16>}, {pipeline_mode = #tpu.pipeline_mode<synchronous>, transform_indices = @transform_2, window_bounds = array<i64: 16, 16>}, {pipeline_mode = #tpu.pipeline_mode<synchronous>, transform_indices = @transform_3, window_bounds = array<i64: 1, 16>}, {pipeline_mode = #tpu.pipeline_mode<synchronous>, transform_indices = @transform_4, window_bounds = array<i64: 16, 128>}, {pipeline_mode = #tpu.pipeline_mode<synchronous>, transform_indices = @transform_5, window_bounds = array<i64: 4, 128>}, {transform_indices = @transform_6, window_bounds = array<i64: 2, 128>}]} {
    %cst = arith.constant 0.000000e+00 : f32
    %0 = vector.broadcast %cst : f32 to vector<2x8x96xf32>
    %c0 = arith.constant 0 : index
    %c0_0 = arith.constant 0 : index
    %c0_1 = arith.constant 0 : index
    %1 = vector.load %arg8[%c0, %c0_0, %c0_1] : memref<2x8x96xf32, #tpu.memory_space<vmem>>, vector<2x8x96xf32>
    tpu.vector_store %arg8[%c0, %c0_0, %c0_1], %0 {strides = array<i32>} : memref<2x8x96xf32, #tpu.memory_space<vmem>>, vector<2x8x96xf32>,
    %c0_2 = arith.constant 0 : index
    %c0_3 = arith.constant 0 : index
    %c0_4 = arith.constant 0 : index
    %2 = vector.load %arg1[%c0_2, %c0_3, %c0_4] : memref<2x8x32xf32, #tpu.memory_space<vmem>>, vector<2x8x32xf32>
    %3 = vector.extract_strided_slice %2 {offsets = [0, 0, 0], sizes = [2, 7, 32], strides = [1, 1, 1]} : vector<2x8x32xf32> to vector<2x7x32xf32>
    %c0_5 = arith.constant 0 : index
    %c1 = arith.constant 1 : index
    %c0_6 = arith.constant 0 : index
    %4 = vector.load %arg8[%c0_5, %c1, %c0_6] : memref<2x8x96xf32, #tpu.memory_space<vmem>>, vector<2x7x32xf32>
    tpu.vector_store %arg8[%c0_5, %c1, %c0_6], %3 {strides = array<i32>} : memref<2x8x96xf32, #tpu.memory_space<vmem>>, vector<2x7x32xf32>,
    %c0_7 = arith.constant 0 : index
    %c0_8 = arith.constant 0 : index
    %c32 = arith.constant 32 : index
    %5 = vector.load %arg8[%c0_7, %c0_8, %c32] : memref<2x8x96xf32, #tpu.memory_space<vmem>>, vector<2x8x32xf32>
    tpu.vector_store %arg8[%c0_7, %c0_8, %c32], %2 {strides = array<i32>} : memref<2x8x96xf32, #tpu.memory_space<vmem>>, vector<2x8x32xf32>,
    %6 = vector.extract_strided_slice %2 {offsets = [0, 1, 0], sizes = [2, 7, 32], strides = [1, 1, 1]} : vector<2x8x32xf32> to vector<2x7x32xf32>
    %c0_9 = arith.constant 0 : index
    %c0_10 = arith.constant 0 : index
    %c64 = arith.constant 64 : index
    %7 = vector.load %arg8[%c0_9, %c0_10, %c64] : memref<2x8x96xf32, #tpu.memory_space<vmem>>, vector<2x7x32xf32>
    tpu.vector_store %arg8[%c0_9, %c0_10, %c64], %6 {strides = array<i32>} : memref<2x8x96xf32, #tpu.memory_space<vmem>>, vector<2x7x32xf32>,
    %c0_11 = arith.constant 0 : index
    %c0_12 = arith.constant 0 : index
    %c0_13 = arith.constant 0 : index
    %8 = vector.load %arg8[%c0_11, %c0_12, %c0_13] : memref<2x8x96xf32, #tpu.memory_space<vmem>>, vector<2x8x96xf32>
    %9 = vector.shape_cast %8 : vector<2x8x96xf32> to vector<16x96xf32>
    %c0_14 = arith.constant 0 : index
    %c0_15 = arith.constant 0 : index
    %10 = vector.load %arg6[%c0_14, %c0_15] : memref<4x128xf32, #tpu.memory_space<vmem>>, vector<1x16xf32>
    %c1_16 = arith.constant 1 : index
    %c0_17 = arith.constant 0 : index
    %11 = vector.load %arg6[%c1_16, %c0_17] : memref<4x128xf32, #tpu.memory_space<vmem>>, vector<1x16xf32>
    %c2 = arith.constant 2 : index
    %c0_18 = arith.constant 0 : index
    %12 = vector.load %arg6[%c2, %c0_18] : memref<4x128xf32, #tpu.memory_space<vmem>>, vector<1x128xf32>
    %c3 = arith.constant 3 : index
    %c0_19 = arith.constant 0 : index
    %13 = vector.load %arg6[%c3, %c0_19] : memref<4x128xf32, #tpu.memory_space<vmem>>, vector<1x1xf32>
    %c0_20 = arith.constant 0 : index
    %c0_21 = arith.constant 0 : index
    %14 = vector.load %arg2[%c0_20, %c0_21] : memref<96x16xf32, #tpu.memory_space<vmem>>, vector<96x16xf32>
    %cst_22 = arith.constant dense<0.000000e+00> : vector<16x16xf32>
    %15 = tpu.matmul %9, %14, %cst_22 {dimension_numbers = #tpu.dot_dimension_numbers<[1], [0], [0], [1], [0, 0, 1, 1], [], []>} : vector<16x96xf32>, vector<96x16xf32>, vector<16x16xf32> -> vector<16x16xf32>
    %16 = vector.broadcast %10 : vector<1x16xf32> to vector<16x16xf32>
    %17 = arith.addf %15, %16 : vector<16x16xf32>
    %cst_23 = arith.constant 0.000000e+00 : f32
    %18 = vector.broadcast %cst_23 : f32 to vector<16x16xf32>
    %19 = arith.maximumf %17, %18 : vector<16x16xf32>
    %c0_24 = arith.constant 0 : index
    %c0_25 = arith.constant 0 : index
    %20 = vector.load %arg3[%c0_24, %c0_25] : memref<16x16xf32, #tpu.memory_space<vmem>>, vector<16x16xf32>
    %cst_26 = arith.constant dense<0.000000e+00> : vector<16x16xf32>
    %21 = tpu.matmul %19, %20, %cst_26 {dimension_numbers = #tpu.dot_dimension_numbers<[1], [0], [0], [1], [0, 0, 1, 1], [], []>} : vector<16x16xf32>, vector<16x16xf32>, vector<16x16xf32> -> vector<16x16xf32>
    %22 = vector.broadcast %11 : vector<1x16xf32> to vector<16x16xf32>
    %23 = arith.addf %21, %22 : vector<16x16xf32>
    %24 = math.tanh %23 : vector<16x16xf32>
    %c0_27 = arith.constant 0 : index
    %c0_28 = arith.constant 0 : index
    %25 = vector.load %arg4[%c0_27, %c0_28] : memref<1x16xf32, #tpu.memory_space<vmem>>, vector<1x16xf32>
    %26 = vector.broadcast %25 : vector<1x16xf32> to vector<16x16xf32>
    %27 = arith.mulf %24, %26 : vector<16x16xf32>
    %cst_29 = arith.constant dense<0.000000e+00> : vector<16xf32>
    %28 = vector.multi_reduction <add>, %27, %cst_29 [1] : vector<16x16xf32> to vector<16xf32>
    %29 = vector.shape_cast %28 : vector<16xf32> to vector<16x1xf32>
    %30 = vector.broadcast %13 : vector<1x1xf32> to vector<16x1xf32>
    %31 = arith.addf %29, %30 : vector<16x1xf32>
    %32 = vector.shape_cast %31 : vector<16x1xf32> to vector<2x8x1xf32>
    %cst_30 = arith.constant dense<0xFF800000> : vector<2x1xf32>
    %33 = vector.multi_reduction <maximumf>, %32, %cst_30 [1] : vector<2x8x1xf32> to vector<2x1xf32>
    %34 = vector.shape_cast %33 : vector<2x1xf32> to vector<2x1x1xf32>
    %35 = vector.broadcast %34 : vector<2x1x1xf32> to vector<2x8x1xf32>
    %36 = arith.subf %32, %35 : vector<2x8x1xf32>
    %37 = math.exp %36 : vector<2x8x1xf32>
    %cst_31 = arith.constant dense<0.000000e+00> : vector<2x1xf32>
    %38 = vector.multi_reduction <add>, %37, %cst_31 [1] : vector<2x8x1xf32> to vector<2x1xf32>
    %39 = vector.shape_cast %38 : vector<2x1xf32> to vector<2x1x1xf32>
    %40 = tpu.reciprocal %39 {approx = true} : vector<2x1x1xf32> -> vector<2x1x1xf32>
    %41 = vector.broadcast %40 : vector<2x1x1xf32> to vector<2x8x1xf32>
    %42 = arith.mulf %37, %41 : vector<2x8x1xf32>
    %43 = vector.shape_cast %19 : vector<16x16xf32> to vector<2x8x16xf32>
    %44 = vector.broadcast %42 : vector<2x8x1xf32> to vector<2x8x16xf32>
    %45 = arith.mulf %44, %43 : vector<2x8x16xf32>
    %cst_32 = arith.constant dense<0.000000e+00> : vector<2x16xf32>
    %46 = vector.multi_reduction <add>, %45, %cst_32 [1] : vector<2x8x16xf32> to vector<2x16xf32>
    %c0_33 = arith.constant 0 : index
    %c0_34 = arith.constant 0 : index
    %47 = vector.load %arg5[%c0_33, %c0_34] : memref<16x128xf32, #tpu.memory_space<vmem>>, vector<16x128xf32>
    %cst_35 = arith.constant dense<0.000000e+00> : vector<2x128xf32>
    %48 = tpu.matmul %46, %47, %cst_35 {dimension_numbers = #tpu.dot_dimension_numbers<[1], [0], [0], [1], [0, 0, 1, 1], [], []>} : vector<2x16xf32>, vector<16x128xf32>, vector<2x128xf32> -> vector<2x128xf32>
    %49 = vector.broadcast %12 : vector<1x128xf32> to vector<2x128xf32>
    %50 = arith.addf %48, %49 : vector<2x128xf32>
    %c0_36 = arith.constant 0 : index
    %c0_37 = arith.constant 0 : index
    %51 = vector.load %arg7[%c0_36, %c0_37] : memref<2x128xf32, #tpu.memory_space<vmem>>, vector<2x128xf32>
    tpu.vector_store %arg7[%c0_36, %c0_37], %50 {strides = array<i32>} : memref<2x128xf32, #tpu.memory_space<vmem>>, vector<2x128xf32>,
    return
  }
  func.func @transform_0(%arg0: i32) -> (i32, i32, i32) {
    %c0_i32 = arith.constant 0 : i32
    %c0_i32_0 = arith.constant 0 : i32
    %c0_i32_1 = arith.constant 0 : i32
    return %arg0, %c0_i32, %c0_i32_0 : i32, i32, i32
  }
  func.func @transform_1(%arg0: i32) -> (i32, i32) {
    %c0_i32 = arith.constant 0 : i32
    %c0_i32_0 = arith.constant 0 : i32
    %c0_i32_1 = arith.constant 0 : i32
    return %c0_i32, %c0_i32_0 : i32, i32
  }
  func.func @transform_2(%arg0: i32) -> (i32, i32) {
    %c0_i32 = arith.constant 0 : i32
    %c0_i32_0 = arith.constant 0 : i32
    %c0_i32_1 = arith.constant 0 : i32
    return %c0_i32, %c0_i32_0 : i32, i32
  }
  func.func @transform_3(%arg0: i32) -> (i32, i32) {
    %c0_i32 = arith.constant 0 : i32
    %c0_i32_0 = arith.constant 0 : i32
    %c0_i32_1 = arith.constant 0 : i32
    return %c0_i32, %c0_i32_0 : i32, i32
  }
  func.func @transform_4(%arg0: i32) -> (i32, i32) {
    %c0_i32 = arith.constant 0 : i32
    %c0_i32_0 = arith.constant 0 : i32
    %c0_i32_1 = arith.constant 0 : i32
    return %c0_i32, %c0_i32_0 : i32, i32
  }
  func.func @transform_5(%arg0: i32) -> (i32, i32) {
    %c0_i32 = arith.constant 0 : i32
    %c0_i32_0 = arith.constant 0 : i32
    %c0_i32_1 = arith.constant 0 : i32
    return %c0_i32, %c0_i32_0 : i32, i32
  }
  func.func @transform_6(%arg0: i32) -> (i32, i32) {
    %c0_i32 = arith.constant 0 : i32
    %c0_i32_0 = arith.constant 0 : i32
    return %arg0, %c0_i32 : i32, i32
  }
}

</mosaic_0001>

<llo_original>
// kernel: tpu_custom_call.1
$region0: #{tpu_custom_call.1}
  #allocation0 [shape = 'u32[]', space=smem, size = 0x4, offset = 0x4, fixed_abs, tag = 'smem constant byte address 0x4 - core index']
  #allocation1 [shape = 'u32[72,128]{1,0:T(1,128)}', space=vmem, size = 0x9000, scoped, tag = 'internal scratch']
  #allocation2 [shape = 'f32[2,8,96]{2,1,0:T(8,128)}', space=vmem, size = 0x2000, scoped, tag = 'scratch operand']
  %s0 = inlined_call_operand.vmem [shape: f32[2,8,32], index: 0, kind: input, shape index: {}]
  %s1 = inlined_call_operand.vmem [shape: f32[96,16], index: 1, kind: input, shape index: {}]
  %s2 = inlined_call_operand.vmem [shape: f32[16,16], index: 2, kind: input, shape index: {}]
  %s3 = inlined_call_operand.vmem [shape: f32[1,16], index: 3, kind: input, shape index: {}]
  %s4 = inlined_call_operand.vmem [shape: f32[16,128], index: 4, kind: input, shape index: {}]
  %s5 = inlined_call_operand.vmem [shape: f32[4,128], index: 5, kind: input, shape index: {}]
  %s6 = inlined_call_operand.hbm [shape: f32[2,128], index: 6, kind: output, shape index: {}]
  %s7 = sld [smem:[#allocation0]]
  $region34: #{tpu_custom_call.1} parent=0
    _
  %s9 = ssub.s32 1, %s7
  %s10 = scalar_select 0, %s9, %s7
  $region1: #{tpu_custom_call.1} parent=0
    #allocation3 [shape = 'u8[1024]{0}', space=vmem, size = 0x400, scoped, tag = 'output window, operand 0, single buffered']
    #allocation4 [shape = 's32[1]{0}', space=sflag, size = 0x4, scoped, tag = 'scoped memory for tpu_custom_call.1']
    %11 = vsyncpa [#allocation4], 0
    // Predicated region
    $region2: #{tpu_custom_call.1} parent=1 // pred_check
      _
    $region3: #{tpu_custom_call.1} parent=1 // pred_check_branch
      %13 = sbr.rel (0) target = $region5
    $region4: #{tpu_custom_call.1} parent=1 // pred_region
      _
    $region5: #{tpu_custom_call.1} parent=1 // pred_fallthru
      _
    // Predicated region
    $region6: #{tpu_custom_call.1} parent=1 // pred_check
      _
    $region7: #{tpu_custom_call.1} parent=1 // pred_check_branch
      %15 = sbr.rel (0) target = $region9
    $region8: #{tpu_custom_call.1} parent=1 // pred_region
      _
    $region9: #{tpu_custom_call.1} parent=1 // pred_fallthru
      _
    // Predicated region
    $region10: #{tpu_custom_call.1} parent=1 // pred_check
      _
    $region11: #{tpu_custom_call.1} parent=1 // pred_check_branch
      %17 = sbr.rel (0) target = $region13
    $region12: #{tpu_custom_call.1} parent=1 // pred_region
      _
    $region13: #{tpu_custom_call.1} parent=1 // pred_fallthru
      _
    // Predicated region
    $region14: #{tpu_custom_call.1} parent=1 // pred_check
      _
    $region15: #{tpu_custom_call.1} parent=1 // pred_check_branch
      %19 = sbr.rel (0) target = $region17
    $region16: #{tpu_custom_call.1} parent=1 // pred_region
      _
    $region17: #{tpu_custom_call.1} parent=1 // pred_fallthru
      _
    // Predicated region
    $region18: #{tpu_custom_call.1} parent=1 // pred_check
      _
    $region19: #{tpu_custom_call.1} parent=1 // pred_check_branch
      %21 = sbr.rel (0) target = $region21
    $region20: #{tpu_custom_call.1} parent=1 // pred_region
      _
    $region21: #{tpu_custom_call.1} parent=1 // pred_fallthru
      _
    // Predicated region
    $region22: #{tpu_custom_call.1} parent=1 // pred_check
      _
    $region23: #{tpu_custom_call.1} parent=1 // pred_check_branch
      %23 = sbr.rel (0) target = $region25
    $region24: #{tpu_custom_call.1} parent=1 // pred_region
      _
    $region25: #{tpu_custom_call.1} parent=1 // pred_fallthru
      _
    %vm24 = vcmask 785408
    %25 = vst.msk [vmem:[#allocation2] sm:$0xff] %vm24, 0.0
    %26 = vst.msk [vmem:[#allocation2 + $0x8] sm:$0xff] %vm24, 0.0
    %v27 = vld [vmem:[%s0] sm:$0xff]
    %v28 = vld [vmem:[%s0 + $0x8] sm:$0xff]
    %vm29 = vcmask 260096
    %30 = vst.msk [vmem:[#allocation2 + $0x1] sm:$0x7f] %vm29, %v27
    %31 = vst.msk [vmem:[#allocation2 + $0x9] sm:$0x7f] %vm29, %v28
    %34 = vrot.lane.b32.xlu0 %v27, 32
    %v35 = vpop.permute.xlu0 %34
    %36 = vrot.lane.b32.xlu0 %v28, 32
    %v37 = vpop.permute.xlu0 %36
    %vm40 = vcmask 523520
    %41 = vst.msk [vmem:[#allocation2] sm:$0xff] %vm40, %v35
    %42 = vst.msk [vmem:[#allocation2 + $0x8] sm:$0xff] %vm40, %v37
    %43 = vrot.lane.b32.xlu0 %v27, 64
    %v44 = vpop.permute.xlu0 %43
    %45 = vrot.lane.b32.xlu0 %v28, 64
    %v46 = vpop.permute.xlu0 %45
    %vm49 = vcmask 785921
    %50 = vst.msk [vmem:[#allocation2 - $0x1] sm:$0xfe] %vm49, %v44
    %51 = vst.msk [vmem:[#allocation2 + $0x7] sm:$0xfe] %vm49, %v46
    %v52 = vld [vmem:[#allocation2] sm:$0xff]
    %v53 = vld [vmem:[#allocation2 + $0x8] sm:$0xff]
    %v54 = vld [vmem:[%s5] sm:$0x1]
    %v55 = vld [vmem:[%s5 + $0x1] sm:$0x1]
    %v56 = vld [vmem:[%s5 + $0x2] sm:$0x1]
    %v57 = vld [vmem:[%s5 + $0x3] sm:$0x1]
    %v58 = vld [vmem:[%s1] sm:$0xff]
    %v59 = vld [vmem:[%s1 + $0x8] sm:$0xff]
    %v60 = vld [vmem:[%s1 + $0x10] sm:$0xff]
    %v61 = vld [vmem:[%s1 + $0x18] sm:$0xff]
    %v62 = vld [vmem:[%s1 + $0x20] sm:$0xff]
    %v63 = vld [vmem:[%s1 + $0x28] sm:$0xff]
    %v64 = vld [vmem:[%s1 + $0x30] sm:$0xff]
    %v65 = vld [vmem:[%s1 + $0x38] sm:$0xff]
    %v66 = vld [vmem:[%s1 + $0x40] sm:$0xff]
    %v67 = vld [vmem:[%s1 + $0x48] sm:$0xff]
    %v68 = vld [vmem:[%s1 + $0x50] sm:$0xff]
    %v69 = vld [vmem:[%s1 + $0x58] sm:$0xff]
    %v70 = vperm.slane %v54, 0
    %v72 = vsel %vm24, %v52, 0
    %v75 = vsel %vm24, %v53, 0
    %77 = vmatpush.msra.mxu0 0.0
    %78 = vmatpush.msra.mxu0 0.0
    %79 = vmatpush.msra.mxu0 0.0
    %80 = vmatpush.msra.mxu0 0.0
    %81 = vmatpush.msra.mxu0 %v69
    %82 = vmatpush.msra.mxu0 %v68
    %83 = vmatpush.msra.mxu0 %v67
    %84 = vmatpush.msra.mxu0 %v66
    %85 = vmatpush.msra.mxu0 %v65
    %86 = vmatpush.msra.mxu0 %v64
    %87 = vmatpush.msra.mxu0 %v63
    %88 = vmatpush.msra.mxu0 %v62
    %89 = vmatpush.msra.mxu0 %v61
    %90 = vmatpush.msra.mxu0 %v60
    %91 = vmatpush.msra.mxu0 %v59
    %92 = vmatpush.msra.mxu0 %v58
    %93 = vmatmul.f32.gmra.mxu0 %v72
    %v94 = vpop.f32.mrf.mxu0
    %v95 = vadd.f32 %v70, %v94
    %96 = vmatmul.f32.gmra.mxu0 %v75
    %v97 = vpop.f32.mrf.mxu0
    %v98 = vadd.f32 %v70, %v97
    %99 = vdwg.mxu0
    %v100 = vmax.f32 %v95, 0.0
    %v101 = vmax.f32 %v98, 0.0
    %v102 = vld [vmem:[%s2] sm:$0xff]
    %v103 = vld [vmem:[%s2 + $0x8] sm:$0xff]
    %v104 = vperm.slane %v55, 0
    %vm105 = vcmask 130048
    %v107 = vsel %vm105, %v100, 0
    %v110 = vsel %vm105, %v101, 0
    %112 = vmatpush.msra.mxu0 0.0
    %113 = vmatpush.msra.mxu0 0.0
    %114 = vmatpush.msra.mxu0 0.0
    %115 = vmatpush.msra.mxu0 0.0
    %116 = vmatpush.msra.mxu0 0.0
    %117 = vmatpush.msra.mxu0 0.0
    %118 = vmatpush.msra.mxu0 0.0
    %119 = vmatpush.msra.mxu0 0.0
    %120 = vmatpush.msra.mxu0 0.0
    %121 = vmatpush.msra.mxu0 0.0
    %122 = vmatpush.msra.mxu0 0.0
    %123 = vmatpush.msra.mxu0 0.0
    %124 = vmatpush.msra.mxu0 0.0
    %125 = vmatpush.msra.mxu0 0.0
    %126 = vmatpush.msra.mxu0 %v103
    %127 = vmatpush.msra.mxu0 %v102
    %128 = vmatmul.f32.gmra.mxu0 %v107
    %v129 = vpop.f32.mrf.mxu0
    %v130 = vadd.f32 %v104, %v129
    %131 = vmatmul.f32.gmra.mxu0 %v110
    %v132 = vpop.f32.mrf.mxu0
    %v133 = vadd.f32 %v104, %v132
    %134 = vdwg.mxu0
    %v135 = vtanh.pop %v130
    %v136 = vtanh.pop %v133
    %v137 = vld [vmem:[%s3] sm:$0x1]
    %v139 = vperm.slane %v137, 0
    %v141 = vmul.f32 %v135, %v139
    %v142 = vmul.f32 %v136, %v139
    %v143 = vsel %vm105, %v141, 0.0
    %144 = vadd.xlane.f32.xlu0 %v143
    %v145 = vpop.xlane.xlu0 %144
    %v146 = vsel %vm105, %v142, 0.0
    %147 = vadd.xlane.f32.xlu0 %v146
    %v148 = vpop.xlane.xlu0 %147
    %v149 = vperm.slane %v57, 0
    %v150 = vadd.f32 %v145, %v149
    %v151 = vadd.f32 %v148, %v149
    %vm152 = vcmask 7168
    %v153 = vsel %vm152, %v150, -inf
    %v154 = vrot.slane %v153, 4
    %v155 = vmax.f32 %v153, %v154
    %v156 = vrot.slane %v155, 2
    %v157 = vmax.f32 %v155, %v156
    %v158 = vrot.slane %v157, 1
    %v159 = vmax.f32 %v157, %v158
    %v160 = vsel %vm152, %v151, -inf
    %v161 = vrot.slane %v160, 4
    %v162 = vmax.f32 %v160, %v161
    %v163 = vrot.slane %v162, 2
    %v164 = vmax.f32 %v162, %v163
    %v165 = vrot.slane %v164, 1
    %v166 = vmax.f32 %v164, %v165
    %v167 = vsub.f32 %v150, %v159
    %v168 = vsub.f32 %v151, %v166
    %v169 = vmul.f32 %v167, 1.442695
    %v170 = vpow.pop %v169
    %v171 = vmul.f32 %v168, 1.442695
    %v172 = vpow.pop %v171
    %v173 = vsel %vm152, %v170, 0.0
    %v174 = vrot.slane %v173, 4
    %v175 = vadd.f32 %v173, %v174
    %v176 = vrot.slane %v175, 2
    %v177 = vadd.f32 %v175, %v176
    %v178 = vrot.slane %v177, 1
    %v179 = vadd.f32 %v177, %v178
    %v180 = vsel %vm152, %v172, 0.0
    %v181 = vrot.slane %v180, 4
    %v182 = vadd.f32 %v180, %v181
    %v183 = vrot.slane %v182, 2
    %v184 = vadd.f32 %v182, %v183
    %v185 = vrot.slane %v184, 1
    %v186 = vadd.f32 %v184, %v185
    %v187 = vrcp.pop %v179
    %v188 = vrcp.pop %v186
    %v189 = vmul.f32 %v170, %v187
    %v190 = vmul.f32 %v172, %v188
    %192 = vset.pattern.permute.xlu0 0
    %193 = vperm.xlu0 %192, %v189
    %v194 = vpop.permute.xlu0 %193
    %197 = vset.pattern.permute.xlu0 0
    %198 = vperm.xlu0 %197, %v190
    %v199 = vpop.permute.xlu0 %198
    %v201 = vmul.f32 %v194, %v100
    %v202 = vmul.f32 %v199, %v101
    %v203 = vsel %vm105, %v201, 0.0
    %v204 = vrot.slane %v203, 4
    %v205 = vadd.f32 %v203, %v204
    %v206 = vrot.slane %v205, 2
    %v207 = vadd.f32 %v205, %v206
    %v208 = vrot.slane %v207, 1
    %v209 = vadd.f32 %v207, %v208
    %v210 = vsel %vm105, %v202, 0.0
    %v211 = vrot.slane %v210, 4
    %v212 = vadd.f32 %v210, %v211
    %v213 = vrot.slane %v212, 2
    %v214 = vadd.f32 %v212, %v213
    %v215 = vrot.slane %v214, 1
    %v216 = vadd.f32 %v214, %v215
    %v217 = vld [vmem:[%s4] sm:$0xff]
    %v218 = vld [vmem:[%s4 + $0x8] sm:$0xff]
    %v219 = vperm.slane %v56, 0
    %vm222 = vcmask 1041409
    %v223 = vsel %vm222, %v216, %v209
    %v224 = vsel %vm105, %v223, 0
    %226 = vmatpush.msra.mxu0 0.0
    %227 = vmatpush.msra.mxu0 0.0
    %228 = vmatpush.msra.mxu0 0.0
    %229 = vmatpush.msra.mxu0 0.0
    %230 = vmatpush.msra.mxu0 0.0
    %231 = vmatpush.msra.mxu0 0.0
    %232 = vmatpush.msra.mxu0 0.0
    %233 = vmatpush.msra.mxu0 0.0
    %234 = vmatpush.msra.mxu0 0.0
    %235 = vmatpush.msra.mxu0 0.0
    %236 = vmatpush.msra.mxu0 0.0
    %237 = vmatpush.msra.mxu0 0.0
    %238 = vmatpush.msra.mxu0 0.0
    %239 = vmatpush.msra.mxu0 0.0
    %240 = vmatpush.msra.mxu0 %v218
    %241 = vmatpush.msra.mxu0 %v217
    %242 = vmatmul.f32.gmra.mxu0 %v224
    %v243 = vpop.f32.mrf.mxu0
    %v244 = vadd.f32 %v219, %v243
    %245 = vdwg.mxu0
    %246 = vst [vmem:[#allocation3] sm:$0x3] %v244
    // Predicated region
    $region26: #{tpu_custom_call.1} parent=1 // pred_check
      _
    $region27: #{tpu_custom_call.1} parent=1 // pred_check_branch
      %248 = sbr.rel (0) target = $region29
    $region28: #{tpu_custom_call.1} parent=1 // pred_region
      %250 = vsyncadd [#allocation4], 0
      %s252 = sshll.u32 [#allocation3], 4
      %s253 = int_to_ptr.vmem [resolvable:$true] %s252
      %s254 = sshll.u32 %s6, 4
      %s255 = int_to_ptr.hbm [resolvable:$true] %s254
      %257 = dma.vmem_to_hbm [thread:$0]  %s253, 32, %s255, [#allocation4]
    $region29: #{tpu_custom_call.1} parent=1 // pred_fallthru
      _
    // Predicated region
    $region30: #{tpu_custom_call.1} parent=1 // pred_check
      _
    $region31: #{tpu_custom_call.1} parent=1 // pred_check_branch
      %259 = sbr.rel (0) target = $region33
    $region32: #{tpu_custom_call.1} parent=1 // pred_region
      %261 = dma.done [#allocation4], 32
    $region33: #{tpu_custom_call.1} parent=1 // pred_fallthru
      _
    %262 = vsyncpa [#allocation4], 1

</llo_original>
